<compile_context>
chip_gen: v5e
topology: v5e:2x2
jax: 0.10.0
libtpu: 0.0.40
codegen_flags: <defaults>
</compile_context>

<pallas_src>
import functools

import jax
import jax.numpy as jnp
from jax.experimental import pallas as pl
from jax.experimental.pallas import tpu as pltpu


# ---------------------------------------------------------------------------
# Kernel
# ---------------------------------------------------------------------------
def _causal_attn_kernel(x_ref, wqkv_ref, o_ref, *, b_blk, seq, d_pad, mxu_dtype):
    """One grid step: fused QKV projection + causal attention for b_blk batches.

    x_ref:    (b_blk*seq, d_in)   flattened activations
    wqkv_ref: (d_in, 3*d_pad)     [q*scale | k | v], each padded to d_pad lanes
    o_ref:    (b_blk*seq, d_pad)
    """
    # ---- Fused QKV projection: one MXU matmul, M = b_blk*seq, N = 3*d_pad.
    x2d = x_ref[...].astype(mxu_dtype)
    wqkv = wqkv_ref[...].astype(mxu_dtype)
    qkv = jnp.dot(x2d, wqkv, preferred_element_type=jnp.float32)  # f32 acc

    # Register-level split to (b_blk, seq, d_pad) per tensor.
    qkv = qkv.reshape(b_blk, seq, 3 * d_pad)
    q = qkv[:, :, 0:d_pad]               # 1/sqrt(d_out) already folded into Wq
    k = qkv[:, :, d_pad:2 * d_pad]
    v = qkv[:, :, 2 * d_pad:3 * d_pad]

    # ---- Batched score matmul: contraction on the feature dim (no explicit
    # k^T materialization, XLU stays free for the softmax reductions).
    s = jnp.einsum("bqd,bkd->bqk",
                   q.astype(mxu_dtype), k.astype(mxu_dtype),
                   preferred_element_type=jnp.float32)       # (b_blk, T, T)

    # Causal mask: key index (axis 2) strictly after query index (axis 1).
    # Applied as -inf BEFORE the max so a masked score can never dominate a
    # column (masked-max underflow hazard from the review).
    qi = jax.lax.broadcasted_iota(jnp.int32, (seq, seq), 0)
    ki = jax.lax.broadcasted_iota(jnp.int32, (seq, seq), 1)
    s = jnp.where((ki > qi)[None, :, :], -jnp.inf, s)

    # Softmax over the *query* axis (axis 1) -- reproduces the PyTorch
    # module's softmax(dim=1).  Every key column keeps its diagonal entry
    # unmasked, so the column max is finite and the denominator is >= 1.
    m = jnp.max(s, axis=1, keepdims=True)
    e = jnp.exp(s - m)                                       # masked -> 0
    denom = jnp.sum(e, axis=1, keepdims=True)
    w = e * pl.reciprocal(denom, approx=True)                # EUP vrcp slot

    # Dropout: identity in eval mode -> nothing to do.

    out = jnp.einsum("bqk,bkd->bqd",
                     w.astype(mxu_dtype), v.astype(mxu_dtype),
                     preferred_element_type=jnp.float32)     # (b_blk, T, d_pad)
    o_ref[...] = out.reshape(b_blk * seq, d_pad).astype(o_ref.dtype)


# ---------------------------------------------------------------------------
# Parameter preparation (run ONCE, not per forward call)
# ---------------------------------------------------------------------------
def prepare_qkv_weights(wq, wk, wv):
    """Fuse, pad and pre-scale the Q/K/V weights at parameter time.

    Returns (wqkv, d_out): wqkv is (d_in, 3*d_pad) with 1/sqrt(d_out) folded
    into the Q columns and each block zero-padded to a multiple of 128 lanes.
    Zero-padded q/k columns do not change the scores; zero v columns are
    sliced off after the kernel.
    """
    d_in, d_out = wq.shape
    d_pad = -(-d_out // 128) * 128
    pad = d_pad - d_out
    scale = 1.0 / float(d_out) ** 0.5        # PyTorch divides by k.shape[-1]**0.5

    def _pad_cols(w):
        return jnp.pad(w, ((0, 0), (0, pad))) if pad else w

    wqkv = jnp.concatenate(
        [_pad_cols(wq * scale), _pad_cols(wk), _pad_cols(wv)], axis=1)
    return wqkv, d_out


# ---------------------------------------------------------------------------
# Generation-aware sizing helpers
# ---------------------------------------------------------------------------
def _tensorcores_per_chip():
    try:
        kind = jax.devices()[0].device_kind.lower()
    except Exception:
        return 1
    # v7x has 2 TensorCores per chip; v5e/v6e have 1.
    return 2 if ("v7" in kind or "tpu7" in kind) else 1


def _default_batch_block(batch):
    if _tensorcores_per_chip() >= 2 and batch >= 2 and batch % 2 == 0:
        return batch // 2          # 2 "parallel" grid steps, one per TensorCore
    return batch                   # single grid step on 1-TC chips (v5e/v6e)


def _vmem_limit_bytes(batch_block, seq, d_in, d_pad):
    f32 = 4
    est = (2 * batch_block * seq * d_in * f32          # x block, double-buffered
           + d_in * 3 * d_pad * f32                    # wqkv, single-buffered
           + 2 * batch_block * seq * d_pad * f32       # out block, double-buffered
           + batch_block * seq * 3 * d_pad * f32       # qkv f32 temporary
           + 4 * batch_block * seq * seq * f32         # s / e / w / mask temps
           + batch_block * seq * d_pad * f32)          # out f32 temporary
    phys = (64 << 20) if _tensorcores_per_chip() >= 2 else (128 << 20)
    return int(min(max(2 * est, 32 << 20), phys))      # 2x compiler headroom


# ---------------------------------------------------------------------------
# pallas_call wrapper
# ---------------------------------------------------------------------------
@functools.partial(
    jax.jit,
    static_argnames=("d_out", "batch_block", "mxu_dtype", "single_buffer_w"))
def _causal_attention_impl(x, wqkv, *, d_out, batch_block, mxu_dtype,
                           single_buffer_w):
    B, T, d_in = x.shape
    d_pad = wqkv.shape[1] // 3
    if B % batch_block != 0:
        raise ValueError("batch must be divisible by batch_block")
    steps = B // batch_block
    m_blk = batch_block * T

    # Free row-major relabel in HBM; keeps the kernel's x block 2-D so the
    # projection needs no in-kernel ref reshape.
    x2d = x.reshape(B * T, d_in)

    kernel = functools.partial(
        _causal_attn_kernel, b_blk=batch_block, seq=T, d_pad=d_pad,
        mxu_dtype=mxu_dtype)

    # The weight's index_map is constant, so a second pipeline buffer buys
    # nothing; single-buffer it to halve its footprint inside v7x's 64 MiB.
    w_spec_kwargs = {}
    if single_buffer_w:
        w_spec_kwargs["pipeline_mode"] = pl.Buffered(1)
    w_spec = pl.BlockSpec((d_in, 3 * d_pad), lambda i: (0, 0), **w_spec_kwargs)

    out2d = pl.pallas_call(
        kernel,
        out_shape=jax.ShapeDtypeStruct((B * T, d_pad), x.dtype),
        grid_spec=pltpu.PrefetchScalarGridSpec(
            num_scalar_prefetch=0,
            grid=(steps,),
            in_specs=[
                pl.BlockSpec((m_blk, d_in), lambda i: (i, 0)),
                w_spec,
            ],
            out_specs=pl.BlockSpec((m_blk, d_pad), lambda i: (i, 0)),
        ),
        compiler_params=pltpu.CompilerParams(
            dimension_semantics=("parallel",),
            vmem_limit_bytes=_vmem_limit_bytes(batch_block, T, d_in, d_pad)),
    )(x2d, wqkv)

    out = out2d.reshape(B, T, d_pad)
    return out[:, :, :d_out] if d_pad != d_out else out


def causal_attention(x, wqkv, d_out, *, batch_block=None,
                     mxu_dtype=jnp.bfloat16):
    """Forward pass of CasualAttention (eval mode).

    x:    (B, T, d_in)
    wqkv: fused weight from prepare_qkv_weights()
    """
    B = x.shape[0]
    if batch_block is None:
        batch_block = _default_batch_block(B)
    try:
        return _causal_attention_impl(
            x, wqkv, d_out=d_out, batch_block=batch_block,
            mxu_dtype=mxu_dtype, single_buffer_w=True)
    except Exception:
        # Fallback for Pallas builds that reject pipeline_mode=pl.Buffered(1).
        return _causal_attention_impl(
            x, wqkv, d_out=d_out, batch_block=batch_block,
            mxu_dtype=mxu_dtype, single_buffer_w=False)


# ---------------------------------------------------------------------------
# Pure-JAX reference (mirror of the PyTorch forward, eval mode, f32)
# ---------------------------------------------------------------------------
def _reference(x, wq, wk, wv):
    q = x @ wq
    k = x @ wk
    v = x @ wv
    s = jnp.einsum("btd,bsd->bts", q, k)
    T = x.shape[1]
    mask = jnp.triu(jnp.ones((T, T), dtype=bool), k=1)
    s = jnp.where(mask[None, :, :], -jnp.inf, s)
    w = jax.nn.softmax(s / jnp.sqrt(jnp.float32(k.shape[-1])), axis=1)
    return jnp.einsum("bts,bsd->btd", w, v)


if __name__ == "__main__":
    # Small shapes consistent with the module: block_size(seq)=8, d_in=32,
    # d_out=32, qkv_bias=False, dropout inactive (eval).  batch=4.
    B, T, D_IN, D_OUT = 4, 8, 32, 32

    key = jax.random.PRNGKey(0)
    kx, kq, kk, kv = jax.random.split(key, 4)
    x = jax.random.normal(kx, (B, T, D_IN), dtype=jnp.float32)
    # Deterministic synthetic weights for SimpleLinear_v1 (y = x @ W, no bias).
    wq = jax.random.normal(kq, (D_IN, D_OUT), dtype=jnp.float32) * 0.05
    wk = jax.random.normal(kk, (D_IN, D_OUT), dtype=jnp.float32) * 0.05
    wv = jax.random.normal(kv, (D_IN, D_OUT), dtype=jnp.float32) * 0.05

    # Weight fusion / padding / pre-scaling happens ONCE, outside the forward.
    wqkv, d_out = prepare_qkv_weights(wq, wk, wv)

    out = causal_attention(x, wqkv, d_out)
    out = jax.block_until_ready(out)

    ref = _reference(x, wq, wk, wv)
    assert out.shape == (B, T, D_OUT)
    # bf16 MXU inputs + approx reciprocal -> compare against the f32 reference
    # with a correspondingly relaxed (but tight for bf16) tolerance.
    err = float(jnp.max(jnp.abs(out - ref)))
    assert jnp.allclose(out, ref, atol=1e-2, rtol=1e-2), (
        f"mismatch vs reference, max abs err {err}")

    print("KERNEL_OK")
</pallas_src>

<mosaic_0001>
module attributes {stable_mosaic.version = 11 : i64} {
  func.func @_causal_attn_kernel(%arg0: i32, %arg1: memref<32x32xf32, #tpu.memory_space<vmem>>, %arg2: memref<32x384xf32, #tpu.memory_space<vmem>>, %arg3: memref<32x128xf32, #tpu.memory_space<vmem>>) attributes {dimension_semantics = [#tpu.dimension_semantics<parallel>], iteration_bounds = array<i64: 1>, scalar_prefetch = 0 : i64, scratch_operands = 0 : i64, tpu.core_type = #tpu.core_type<tc>, window_params = [{transform_indices = @transform_0, window_bounds = array<i64: 32, 32>}, {pipeline_mode = #tpu.pipeline_mode<synchronous>, transform_indices = @transform_1, window_bounds = array<i64: 32, 384>}, {transform_indices = @transform_2, window_bounds = array<i64: 32, 128>}]} {
    %c0 = arith.constant 0 : index
    %c0_0 = arith.constant 0 : index
    %0 = vector.load %arg1[%c0, %c0_0] : memref<32x32xf32, #tpu.memory_space<vmem>>, vector<32x32xf32>
    %1 = arith.truncf %0 : vector<32x32xf32> to vector<32x32xbf16>
    %c0_1 = arith.constant 0 : index
    %c0_2 = arith.constant 0 : index
    %2 = vector.load %arg2[%c0_1, %c0_2] : memref<32x384xf32, #tpu.memory_space<vmem>>, vector<32x384xf32>
    %3 = arith.truncf %2 : vector<32x384xf32> to vector<32x384xbf16>
    %cst = arith.constant dense<0.000000e+00> : vector<32x384xf32>
    %4 = tpu.matmul %1, %3, %cst {dimension_numbers = #tpu.dot_dimension_numbers<[1], [0], [0], [1], [0, 0, 1, 1], [], []>} : vector<32x32xbf16>, vector<32x384xbf16>, vector<32x384xf32> -> vector<32x384xf32>
    %5 = vector.shape_cast %4 : vector<32x384xf32> to vector<4x8x384xf32>
    %6 = vector.extract_strided_slice %5 {offsets = [0, 0, 0], sizes = [4, 8, 128], strides = [1, 1, 1]} : vector<4x8x384xf32> to vector<4x8x128xf32>
    %7 = vector.extract_strided_slice %5 {offsets = [0, 0, 128], sizes = [4, 8, 128], strides = [1, 1, 1]} : vector<4x8x384xf32> to vector<4x8x128xf32>
    %8 = vector.extract_strided_slice %5 {offsets = [0, 0, 256], sizes = [4, 8, 128], strides = [1, 1, 1]} : vector<4x8x384xf32> to vector<4x8x128xf32>
    %9 = arith.truncf %6 : vector<4x8x128xf32> to vector<4x8x128xbf16>
    %10 = arith.truncf %7 : vector<4x8x128xf32> to vector<4x8x128xbf16>
    "tpu.trace_start"() <{level = 10 : i32, message = "bqd,bkd->bqk"}> : () -> ()
    %cst_3 = arith.constant dense<0.000000e+00> : vector<4x8x8xf32>
    %11 = tpu.matmul %9, %10, %cst_3 {dimension_numbers = #tpu.dot_dimension_numbers<[2], [2], [1], [1], [0, 0, 0, 1, 1, 1], [0], [0]>} : vector<4x8x128xbf16>, vector<4x8x128xbf16>, vector<4x8x8xf32> -> vector<4x8x8xf32>
    "tpu.trace_stop"() : () -> ()
    %12 = tpu.iota {dimensions = array<i32: 0>} : vector<8x8xi32>
    %13 = tpu.iota {dimensions = array<i32: 1>} : vector<8x8xi32>
    %14 = arith.cmpi sgt, %13, %12 : vector<8x8xi32>
    %15 = vector.shape_cast %14 : vector<8x8xi1> to vector<1x8x8xi1>
    %cst_4 = arith.constant 0xFF800000 : f32
    %16 = vector.shape_cast %15 : vector<1x8x8xi1> to vector<1x8x8xi1>
    %17 = vector.broadcast %16 : vector<1x8x8xi1> to vector<4x8x8xi1>
    %18 = vector.broadcast %cst_4 : f32 to vector<4x8x8xf32>
    %19 = arith.select %17, %18, %11 : vector<4x8x8xi1>, vector<4x8x8xf32>
    %cst_5 = arith.constant dense<0xFF800000> : vector<4x8xf32>
    %20 = vector.multi_reduction <maximumf>, %19, %cst_5 [1] : vector<4x8x8xf32> to vector<4x8xf32>
    %21 = vector.shape_cast %20 : vector<4x8xf32> to vector<4x1x8xf32>
    %22 = vector.broadcast %21 : vector<4x1x8xf32> to vector<4x8x8xf32>
    %23 = arith.subf %19, %22 : vector<4x8x8xf32>
    %24 = math.exp %23 : vector<4x8x8xf32>
    %cst_6 = arith.constant dense<0.000000e+00> : vector<4x8xf32>
    %25 = vector.multi_reduction <add>, %24, %cst_6 [1] : vector<4x8x8xf32> to vector<4x8xf32>
    %26 = vector.shape_cast %25 : vector<4x8xf32> to vector<4x1x8xf32>
    %27 = tpu.reciprocal %26 {approx = true} : vector<4x1x8xf32> -> vector<4x1x8xf32>
    %28 = vector.broadcast %27 : vector<4x1x8xf32> to vector<4x8x8xf32>
    %29 = arith.mulf %24, %28 : vector<4x8x8xf32>
    %30 = arith.truncf %29 : vector<4x8x8xf32> to vector<4x8x8xbf16>
    %31 = arith.truncf %8 : vector<4x8x128xf32> to vector<4x8x128xbf16>
    "tpu.trace_start"() <{level = 10 : i32, message = "bqk,bkd->bqd"}> : () -> ()
    %cst_7 = arith.constant dense<0.000000e+00> : vector<4x8x128xf32>
    %32 = tpu.matmul %30, %31, %cst_7 {dimension_numbers = #tpu.dot_dimension_numbers<[2], [1], [1], [2], [0, 0, 0, 1, 1, 2], [0], [0]>} : vector<4x8x8xbf16>, vector<4x8x128xbf16>, vector<4x8x128xf32> -> vector<4x8x128xf32>
    "tpu.trace_stop"() : () -> ()
    %33 = vector.shape_cast %32 : vector<4x8x128xf32> to vector<32x128xf32>
    %c0_8 = arith.constant 0 : index
    %c0_9 = arith.constant 0 : index
    %34 = vector.load %arg3[%c0_8, %c0_9] : memref<32x128xf32, #tpu.memory_space<vmem>>, vector<32x128xf32>
    tpu.vector_store %arg3[%c0_8, %c0_9], %33 {strides = array<i32>} : memref<32x128xf32, #tpu.memory_space<vmem>>, vector<32x128xf32>,
    return
  }
  func.func @transform_0(%arg0: i32) -> (i32, i32) {
    %c0_i32 = arith.constant 0 : i32
    %c0_i32_0 = arith.constant 0 : i32
    return %arg0, %c0_i32 : i32, i32
  }
  func.func @transform_1(%arg0: i32) -> (i32, i32) {
    %c0_i32 = arith.constant 0 : i32
    %c0_i32_0 = arith.constant 0 : i32
    %c0_i32_1 = arith.constant 0 : i32
    return %c0_i32, %c0_i32_0 : i32, i32
  }
  func.func @transform_2(%arg0: i32) -> (i32, i32) {
    %c0_i32 = arith.constant 0 : i32
    %c0_i32_0 = arith.constant 0 : i32
    return %arg0, %c0_i32 : i32, i32
  }
}

module attributes {stable_mosaic.version = 11 : i64} {
  func.func @_causal_attn_kernel(%arg0: i32, %arg1: memref<32x32xf32, #tpu.memory_space<vmem>>, %arg2: memref<32x384xf32, #tpu.memory_space<vmem>>, %arg3: memref<32x128xf32, #tpu.memory_space<vmem>>) attributes {dimension_semantics = [#tpu.dimension_semantics<parallel>], iteration_bounds = array<i64: 1>, scalar_prefetch = 0 : i64, scratch_operands = 0 : i64, tpu.core_type = #tpu.core_type<tc>, window_params = [{transform_indices = @transform_0, window_bounds = array<i64: 32, 32>}, {pipeline_mode = #tpu.pipeline_mode<synchronous>, transform_indices = @transform_1, window_bounds = array<i64: 32, 384>}, {transform_indices = @transform_2, window_bounds = array<i64: 32, 128>}]} {
    %c0 = arith.constant 0 : index
    %c0_0 = arith.constant 0 : index
    %0 = vector.load %arg1[%c0, %c0_0] : memref<32x32xf32, #tpu.memory_space<vmem>>, vector<32x32xf32>
    %1 = arith.truncf %0 : vector<32x32xf32> to vector<32x32xbf16>
    %c0_1 = arith.constant 0 : index
    %c0_2 = arith.constant 0 : index
    %2 = vector.load %arg2[%c0_1, %c0_2] : memref<32x384xf32, #tpu.memory_space<vmem>>, vector<32x384xf32>
    %3 = arith.truncf %2 : vector<32x384xf32> to vector<32x384xbf16>
    %cst = arith.constant dense<0.000000e+00> : vector<32x384xf32>
    %4 = tpu.matmul %1, %3, %cst {dimension_numbers = #tpu.dot_dimension_numbers<[1], [0], [0], [1], [0, 0, 1, 1], [], []>} : vector<32x32xbf16>, vector<32x384xbf16>, vector<32x384xf32> -> vector<32x384xf32>
    %5 = vector.shape_cast %4 : vector<32x384xf32> to vector<4x8x384xf32>
    %6 = vector.extract_strided_slice %5 {offsets = [0, 0, 0], sizes = [4, 8, 128], strides = [1, 1, 1]} : vector<4x8x384xf32> to vector<4x8x128xf32>
    %7 = vector.extract_strided_slice %5 {offsets = [0, 0, 128], sizes = [4, 8, 128], strides = [1, 1, 1]} : vector<4x8x384xf32> to vector<4x8x128xf32>
    %8 = vector.extract_strided_slice %5 {offsets = [0, 0, 256], sizes = [4, 8, 128], strides = [1, 1, 1]} : vector<4x8x384xf32> to vector<4x8x128xf32>
    %9 = arith.truncf %6 : vector<4x8x128xf32> to vector<4x8x128xbf16>
    %10 = arith.truncf %7 : vector<4x8x128xf32> to vector<4x8x128xbf16>
    "tpu.trace_start"() <{level = 10 : i32, message = "bqd,bkd->bqk"}> : () -> ()
    %cst_3 = arith.constant dense<0.000000e+00> : vector<4x8x8xf32>
    %11 = tpu.matmul %9, %10, %cst_3 {dimension_numbers = #tpu.dot_dimension_numbers<[2], [2], [1], [1], [0, 0, 0, 1, 1, 1], [0], [0]>} : vector<4x8x128xbf16>, vector<4x8x128xbf16>, vector<4x8x8xf32> -> vector<4x8x8xf32>
    "tpu.trace_stop"() : () -> ()
    %12 = tpu.iota {dimensions = array<i32: 0>} : vector<8x8xi32>
    %13 = tpu.iota {dimensions = array<i32: 1>} : vector<8x8xi32>
    %14 = arith.cmpi sgt, %13, %12 : vector<8x8xi32>
    %15 = vector.shape_cast %14 : vector<8x8xi1> to vector<1x8x8xi1>
    %cst_4 = arith.constant 0xFF800000 : f32
    %16 = vector.shape_cast %15 : vector<1x8x8xi1> to vector<1x8x8xi1>
    %17 = vector.broadcast %16 : vector<1x8x8xi1> to vector<4x8x8xi1>
    %18 = vector.broadcast %cst_4 : f32 to vector<4x8x8xf32>
    %19 = arith.select %17, %18, %11 : vector<4x8x8xi1>, vector<4x8x8xf32>
    %cst_5 = arith.constant dense<0xFF800000> : vector<4x8xf32>
    %20 = vector.multi_reduction <maximumf>, %19, %cst_5 [1] : vector<4x8x8xf32> to vector<4x8xf32>
    %21 = vector.shape_cast %20 : vector<4x8xf32> to vector<4x1x8xf32>
    %22 = vector.broadcast %21 : vector<4x1x8xf32> to vector<4x8x8xf32>
    %23 = arith.subf %19, %22 : vector<4x8x8xf32>
    %24 = math.exp %23 : vector<4x8x8xf32>
    %cst_6 = arith.constant dense<0.000000e+00> : vector<4x8xf32>
    %25 = vector.multi_reduction <add>, %24, %cst_6 [1] : vector<4x8x8xf32> to vector<4x8xf32>
    %26 = vector.shape_cast %25 : vector<4x8xf32> to vector<4x1x8xf32>
    %27 = tpu.reciprocal %26 {approx = true} : vector<4x1x8xf32> -> vector<4x1x8xf32>
    %28 = vector.broadcast %27 : vector<4x1x8xf32> to vector<4x8x8xf32>
    %29 = arith.mulf %24, %28 : vector<4x8x8xf32>
    %30 = arith.truncf %29 : vector<4x8x8xf32> to vector<4x8x8xbf16>
    %31 = arith.truncf %8 : vector<4x8x128xf32> to vector<4x8x128xbf16>
    "tpu.trace_start"() <{level = 10 : i32, message = "bqk,bkd->bqd"}> : () -> ()
    %cst_7 = arith.constant dense<0.000000e+00> : vector<4x8x128xf32>
    %32 = tpu.matmul %30, %31, %cst_7 {dimension_numbers = #tpu.dot_dimension_numbers<[2], [1], [1], [2], [0, 0, 0, 1, 1, 2], [0], [0]>} : vector<4x8x8xbf16>, vector<4x8x128xbf16>, vector<4x8x128xf32> -> vector<4x8x128xf32>
    "tpu.trace_stop"() : () -> ()
    %33 = vector.shape_cast %32 : vector<4x8x128xf32> to vector<32x128xf32>
    %c0_8 = arith.constant 0 : index
    %c0_9 = arith.constant 0 : index
    %34 = vector.load %arg3[%c0_8, %c0_9] : memref<32x128xf32, #tpu.memory_space<vmem>>, vector<32x128xf32>
    tpu.vector_store %arg3[%c0_8, %c0_9], %33 {strides = array<i32>} : memref<32x128xf32, #tpu.memory_space<vmem>>, vector<32x128xf32>,
    return
  }
  func.func @transform_0(%arg0: i32) -> (i32, i32) {
    %c0_i32 = arith.constant 0 : i32
    %c0_i32_0 = arith.constant 0 : i32
    return %arg0, %c0_i32 : i32, i32
  }
  func.func @transform_1(%arg0: i32) -> (i32, i32) {
    %c0_i32 = arith.constant 0 : i32
    %c0_i32_0 = arith.constant 0 : i32
    %c0_i32_1 = arith.constant 0 : i32
    return %c0_i32, %c0_i32_0 : i32, i32
  }
  func.func @transform_2(%arg0: i32) -> (i32, i32) {
    %c0_i32 = arith.constant 0 : i32
    %c0_i32_0 = arith.constant 0 : i32
    return %arg0, %c0_i32 : i32, i32
  }
}

</mosaic_0001>

<llo_original>
// kernel: _causal_attention_impl.1
$region0: #{_causal_attention_impl.1}
  #allocation0 [shape = 'u32[]', space=smem, size = 0x4, offset = 0x4, fixed_abs, tag = 'smem constant byte address 0x4 - core index']
  #allocation1 [shape = 'u32[72,128]{1,0:T(1,128)}', space=vmem, size = 0x9000, scoped, tag = 'internal scratch']
  %s0 = inlined_call_operand.hbm [shape: f32[32,32], index: 0, kind: input, shape index: {}]
  %s1 = inlined_call_operand.hbm [shape: f32[32,384], index: 1, kind: input, shape index: {}]
  %s2 = inlined_call_operand.hbm [shape: f32[32,128], index: 2, kind: output, shape index: {}]
  %s3 = sld [smem:[#allocation0]]
  $region26: #{_causal_attention_impl.1} parent=0
    _
  %s5 = ssub.s32 1, %s3
  %s6 = scalar_select 0, %s5, %s3
  $region1: #{_causal_attention_impl.1} parent=0
    #allocation2 [shape = 'u8[16384]{0}', space=vmem, size = 0x4000, scoped, tag = 'input window, operand 0, single buffered']
    #allocation3 [shape = 's32[1]{0}', space=sflag, size = 0x4, scoped, tag = 'scoped memory for _causal_attention_impl.1']
    #allocation4 [shape = 's32[1]{0}', space=sflag, size = 0x4, scoped, tag = 'scoped memory for _causal_attention_impl.1']
    #allocation5 [shape = 'u8[49152]{0}', space=vmem, size = 0xc000, scoped, tag = 'input window, operand 1, single buffered']
    #allocation6 [shape = 's32[1]{0}', space=sflag, size = 0x4, scoped, tag = 'scoped memory for _causal_attention_impl.1']
    #allocation7 [shape = 'u8[16384]{0}', space=vmem, size = 0x4000, scoped, tag = 'output window, operand 0, single buffered']
    %7 = vsyncpa [#allocation3], 0
    %8 = vsyncpa [#allocation6], 0
    %9 = vsyncpa [#allocation4], 0
    // Predicated region
    $region2: #{_causal_attention_impl.1} parent=1 // pred_check
      _
    $region3: #{_causal_attention_impl.1} parent=1 // pred_check_branch
      %11 = sbr.rel (0) target = $region5
    $region4: #{_causal_attention_impl.1} parent=1 // pred_region
      %13 = vsyncadd [#allocation3], 0
      %s14 = sshll.u32 %s0, 4
      %s15 = int_to_ptr.hbm [resolvable:$true] %s14
      %s16 = sshll.u32 [#allocation2], 4
      %s17 = int_to_ptr.vmem [resolvable:$true] %s16
      %22 = dma.hbm_to_vmem [thread:$0]  %s15, 512, %s17, [#allocation3], 128, 128, 8
    $region5: #{_causal_attention_impl.1} parent=1 // pred_fallthru
      _
    // Predicated region
    $region6: #{_causal_attention_impl.1} parent=1 // pred_check
      _
    $region7: #{_causal_attention_impl.1} parent=1 // pred_check_branch
      %24 = sbr.rel (0) target = $region9
    $region8: #{_causal_attention_impl.1} parent=1 // pred_region
      %26 = vsyncadd [#allocation6], 0
      %s27 = sshll.u32 %s1, 4
      %s28 = int_to_ptr.hbm [resolvable:$true] %s27
      %s29 = sshll.u32 [#allocation5], 4
      %s30 = int_to_ptr.vmem [resolvable:$true] %s29
      %35 = dma.hbm_to_vmem [thread:$0]  %s28, 1536, %s30, [#allocation6], 384, 384, 24
    $region9: #{_causal_attention_impl.1} parent=1 // pred_fallthru
      _
    // Predicated region
    $region10: #{_causal_attention_impl.1} parent=1 // pred_check
      _
    $region11: #{_causal_attention_impl.1} parent=1 // pred_check_branch
      %37 = sbr.rel (0) target = $region13
    $region12: #{_causal_attention_impl.1} parent=1 // pred_region
      %39 = dma.done [#allocation3], 512
    $region13: #{_causal_attention_impl.1} parent=1 // pred_fallthru
      _
    // Predicated region
    $region14: #{_causal_attention_impl.1} parent=1 // pred_check
      _
    $region15: #{_causal_attention_impl.1} parent=1 // pred_check_branch
      %41 = sbr.rel (0) target = $region17
    $region16: #{_causal_attention_impl.1} parent=1 // pred_region
      %43 = dma.done [#allocation6], 1536
    $region17: #{_causal_attention_impl.1} parent=1 // pred_fallthru
      _
    %v45 = vld [vmem:[#allocation2] sm:$0xff]
    %v46 = vld [vmem:[#allocation2 + $0x8] sm:$0xff]
    %v47 = vld [vmem:[#allocation2 + $0x10] sm:$0xff]
    %v48 = vld [vmem:[#allocation2 + $0x18] sm:$0xff]
    %v49 = vpack.c.bf16 %v46, %v45
    %v50 = vpack.c.bf16 %v48, %v47
    %v51 = vld [vmem:[#allocation5] sm:$0xff]
    %v52 = vld [vmem:[#allocation5 + $0x8] sm:$0xff]
    %v53 = vld [vmem:[#allocation5 + $0x10] sm:$0xff]
    %v54 = vld [vmem:[#allocation5 + $0x18] sm:$0xff]
    %v55 = vld [vmem:[#allocation5 + $0x20] sm:$0xff]
    %v56 = vld [vmem:[#allocation5 + $0x28] sm:$0xff]
    %v57 = vld [vmem:[#allocation5 + $0x30] sm:$0xff]
    %v58 = vld [vmem:[#allocation5 + $0x38] sm:$0xff]
    %v59 = vld [vmem:[#allocation5 + $0x40] sm:$0xff]
    %v60 = vld [vmem:[#allocation5 + $0x48] sm:$0xff]
    %v61 = vld [vmem:[#allocation5 + $0x50] sm:$0xff]
    %v62 = vld [vmem:[#allocation5 + $0x58] sm:$0xff]
    %v63 = vpack.c.bf16 %v54, %v51
    %v64 = vpack.c.bf16 %v55, %v52
    %v65 = vpack.c.bf16 %v56, %v53
    %v66 = vpack.c.bf16 %v60, %v57
    %v67 = vpack.c.bf16 %v61, %v58
    %v68 = vpack.c.bf16 %v62, %v59
    %vm69 = vcmask 261120
    %v71 = vsel %vm69, %v49, 0
    %v74 = vsel %vm69, %v50, 0
    %76 = vmatpush.bf16.msra.mxu0 0
    %77 = vmatpush.bf16.msra.mxu0 0
    %78 = vmatpush.bf16.msra.mxu0 0
    %79 = vmatpush.bf16.msra.mxu0 0
    %80 = vmatpush.bf16.msra.mxu0 0
    %81 = vmatpush.bf16.msra.mxu0 0
    %82 = vmatpush.bf16.msra.mxu0 %v66
    %83 = vmatpush.bf16.msra.mxu0 %v63
    %84 = vmatmul.bf16.gmra.mxu0 %v71
    %v85 = vpop.f32.mrf.mxu0
    %v86 = vadd.f32 0.0, %v85
    %v87 = vpop.f32.mrf.mxu0
    %v88 = vadd.f32 0.0, %v87
    %89 = vmatmul.bf16.gmra.mxu0 %v74
    %v90 = vpop.f32.mrf.mxu0
    %v91 = vadd.f32 0.0, %v90
    %v92 = vpop.f32.mrf.mxu0
    %v93 = vadd.f32 0.0, %v92
    %94 = vdwg.mxu0
    %95 = vmatpush.bf16.msra.mxu0 0
    %96 = vmatpush.bf16.msra.mxu0 0
    %97 = vmatpush.bf16.msra.mxu0 0
    %98 = vmatpush.bf16.msra.mxu0 0
    %99 = vmatpush.bf16.msra.mxu0 0
    %100 = vmatpush.bf16.msra.mxu0 0
    %101 = vmatpush.bf16.msra.mxu0 %v67
    %102 = vmatpush.bf16.msra.mxu0 %v64
    %103 = vmatmul.bf16.gmra.mxu0 %v71
    %v104 = vpop.f32.mrf.mxu0
    %v105 = vadd.f32 0.0, %v104
    %v106 = vpop.f32.mrf.mxu0
    %v107 = vadd.f32 0.0, %v106
    %108 = vmatmul.bf16.gmra.mxu0 %v74
    %v109 = vpop.f32.mrf.mxu0
    %v110 = vadd.f32 0.0, %v109
    %v111 = vpop.f32.mrf.mxu0
    %v112 = vadd.f32 0.0, %v111
    %113 = vdwg.mxu0
    %114 = vmatpush.bf16.msra.mxu0 0
    %115 = vmatpush.bf16.msra.mxu0 0
    %116 = vmatpush.bf16.msra.mxu0 0
    %117 = vmatpush.bf16.msra.mxu0 0
    %118 = vmatpush.bf16.msra.mxu0 0
    %119 = vmatpush.bf16.msra.mxu0 0
    %120 = vmatpush.bf16.msra.mxu0 %v68
    %121 = vmatpush.bf16.msra.mxu0 %v65
    %122 = vmatmul.bf16.gmra.mxu0 %v71
    %v123 = vpop.f32.mrf.mxu0
    %v124 = vadd.f32 0.0, %v123
    %v125 = vpop.f32.mrf.mxu0
    %v126 = vadd.f32 0.0, %v125
    %127 = vmatmul.bf16.gmra.mxu0 %v74
    %v128 = vpop.f32.mrf.mxu0
    %v129 = vadd.f32 0.0, %v128
    %v130 = vpop.f32.mrf.mxu0
    %v131 = vadd.f32 0.0, %v130
    %132 = vdwg.mxu0
    %v133 = vpack.c.bf16 %v86, %v86
    %v134 = vpack.c.bf16 %v88, %v88
    %v135 = vpack.c.bf16 %v91, %v91
    %v136 = vpack.c.bf16 %v93, %v93
    %v137 = vpack.c.bf16 %v105, %v105
    %v138 = vpack.c.bf16 %v107, %v107
    %v139 = vpack.c.bf16 %v110, %v110
    %v140 = vpack.c.bf16 %v112, %v112
    %141 = vmatpush.bf16.xpose.msra.mxu0 0
    %142 = vmatpush.bf16.xpose.msra.mxu0 0
    %143 = vmatpush.bf16.xpose.msra.mxu0 0
    %144 = vmatpush.bf16.xpose.msra.mxu0 0
    %145 = vmatpush.bf16.xpose.msra.mxu0 0
    %146 = vmatpush.bf16.xpose.msra.mxu0 0
    %147 = vmatpush.bf16.xpose.msra.mxu0 0
    %148 = vmatpush.bf16.xpose.msra.mxu0 %v137
    %149 = vmatmul.bf16.gmra.mxu0 %v133
    %v150 = vpop.f32.mrf.mxu0
    %v151 = vadd.f32 0.0, %v150
    %v152 = vpop.f32.mrf.mxu0
    %153 = vdwg.mxu0
    %154 = vmatpush.bf16.xpose.msra.mxu0 0
    %155 = vmatpush.bf16.xpose.msra.mxu0 0
    %156 = vmatpush.bf16.xpose.msra.mxu0 0
    %157 = vmatpush.bf16.xpose.msra.mxu0 0
    %158 = vmatpush.bf16.xpose.msra.mxu0 0
    %159 = vmatpush.bf16.xpose.msra.mxu0 0
    %160 = vmatpush.bf16.xpose.msra.mxu0 0
    %161 = vmatpush.bf16.xpose.msra.mxu0 %v138
    %162 = vmatmul.bf16.gmra.mxu0 %v134
    %v163 = vpop.f32.mrf.mxu0
    %v164 = vadd.f32 0.0, %v163
    %v165 = vpop.f32.mrf.mxu0
    %166 = vdwg.mxu0
    %167 = vmatpush.bf16.xpose.msra.mxu0 0
    %168 = vmatpush.bf16.xpose.msra.mxu0 0
    %169 = vmatpush.bf16.xpose.msra.mxu0 0
    %170 = vmatpush.bf16.xpose.msra.mxu0 0
    %171 = vmatpush.bf16.xpose.msra.mxu0 0
    %172 = vmatpush.bf16.xpose.msra.mxu0 0
    %173 = vmatpush.bf16.xpose.msra.mxu0 0
    %174 = vmatpush.bf16.xpose.msra.mxu0 %v139
    %175 = vmatmul.bf16.gmra.mxu0 %v135
    %v176 = vpop.f32.mrf.mxu0
    %v177 = vadd.f32 0.0, %v176
    %v178 = vpop.f32.mrf.mxu0
    %179 = vdwg.mxu0
    %180 = vmatpush.bf16.xpose.msra.mxu0 0
    %181 = vmatpush.bf16.xpose.msra.mxu0 0
    %182 = vmatpush.bf16.xpose.msra.mxu0 0
    %183 = vmatpush.bf16.xpose.msra.mxu0 0
    %184 = vmatpush.bf16.xpose.msra.mxu0 0
    %185 = vmatpush.bf16.xpose.msra.mxu0 0
    %186 = vmatpush.bf16.xpose.msra.mxu0 0
    %187 = vmatpush.bf16.xpose.msra.mxu0 %v140
    %188 = vmatmul.bf16.gmra.mxu0 %v136
    %v189 = vpop.f32.mrf.mxu0
    %v190 = vadd.f32 0.0, %v189
    %v191 = vpop.f32.mrf.mxu0
    %192 = vdwg.mxu0
    %v193 = vlaneseq
    %v194 = vshrl.u32 %v193, 7
    %v195 = vlaneseq
    %v196 = vand.u32 %v195, 127
    %vm197 = vcmp.gt.s32.totalorder %v196, %v194
    %v198 = vsel %vm197, 1, 0
    %vm199 = vcmp.eq.s32.totalorder %v198, 1
    %v200 = vsel %vm199, -inf, %v151
    %v201 = vsel %vm199, -inf, %v164
    %v202 = vsel %vm199, -inf, %v177
    %v203 = vsel %vm199, -inf, %v190
    %vm204 = vcmask 64512
    %v205 = vsel %vm204, %v200, -inf
    %v206 = vrot.slane %v205, 4
    %v207 = vmax.f32 %v205, %v206
    %v208 = vrot.slane %v207, 2
    %v209 = vmax.f32 %v207, %v208
    %v210 = vrot.slane %v209, 1
    %v211 = vmax.f32 %v209, %v210
    %v212 = vsel %vm204, %v201, -inf
    %v213 = vrot.slane %v212, 4
    %v214 = vmax.f32 %v212, %v213
    %v215 = vrot.slane %v214, 2
    %v216 = vmax.f32 %v214, %v215
    %v217 = vrot.slane %v216, 1
    %v218 = vmax.f32 %v216, %v217
    %v219 = vsel %vm204, %v202, -inf
    %v220 = vrot.slane %v219, 4
    %v221 = vmax.f32 %v219, %v220
    %v222 = vrot.slane %v221, 2
    %v223 = vmax.f32 %v221, %v222
    %v224 = vrot.slane %v223, 1
    %v225 = vmax.f32 %v223, %v224
    %v226 = vsel %vm204, %v203, -inf
    %v227 = vrot.slane %v226, 4
    %v228 = vmax.f32 %v226, %v227
    %v229 = vrot.slane %v228, 2
    %v230 = vmax.f32 %v228, %v229
    %v231 = vrot.slane %v230, 1
    %v232 = vmax.f32 %v230, %v231
    %v233 = vsub.f32 %v200, %v211
    %v234 = vsub.f32 %v201, %v218
    %v235 = vsub.f32 %v202, %v225
    %v236 = vsub.f32 %v203, %v232
    %v237 = vmul.f32 %v233, 1.442695
    %v238 = vpow.pop %v237
    %v239 = vmul.f32 %v234, 1.442695
    %v240 = vpow.pop %v239
    %v241 = vmul.f32 %v235, 1.442695
    %v242 = vpow.pop %v241
    %v243 = vmul.f32 %v236, 1.442695
    %v244 = vpow.pop %v243
    %v245 = vsel %vm204, %v238, 0.0
    %v246 = vrot.slane %v245, 4
    %v247 = vadd.f32 %v245, %v246
    %v248 = vrot.slane %v247, 2
    %v249 = vadd.f32 %v247, %v248
    %v250 = vrot.slane %v249, 1
    %v251 = vadd.f32 %v249, %v250
    %v252 = vsel %vm204, %v240, 0.0
    %v253 = vrot.slane %v252, 4
    %v254 = vadd.f32 %v252, %v253
    %v255 = vrot.slane %v254, 2
    %v256 = vadd.f32 %v254, %v255
    %v257 = vrot.slane %v256, 1
    %v258 = vadd.f32 %v256, %v257
    %v259 = vsel %vm204, %v242, 0.0
    %v260 = vrot.slane %v259, 4
    %v261 = vadd.f32 %v259, %v260
    %v262 = vrot.slane %v261, 2
    %v263 = vadd.f32 %v261, %v262
    %v264 = vrot.slane %v263, 1
    %v265 = vadd.f32 %v263, %v264
    %v266 = vsel %vm204, %v244, 0.0
    %v267 = vrot.slane %v266, 4
    %v268 = vadd.f32 %v266, %v267
    %v269 = vrot.slane %v268, 2
    %v270 = vadd.f32 %v268, %v269
    %v271 = vrot.slane %v270, 1
    %v272 = vadd.f32 %v270, %v271
    %v273 = vrcp.pop %v251
    %v274 = vrcp.pop %v258
    %v275 = vrcp.pop %v265
    %v276 = vrcp.pop %v272
    %v277 = vmul.f32 %v238, %v273
    %v278 = vmul.f32 %v240, %v274
    %v279 = vmul.f32 %v242, %v275
    %v280 = vmul.f32 %v244, %v276
    %v281 = vpack.c.bf16 %v277, %v277
    %v282 = vpack.c.bf16 %v278, %v278
    %v283 = vpack.c.bf16 %v279, %v279
    %v284 = vpack.c.bf16 %v280, %v280
    %v285 = vpack.c.bf16 %v124, %v124
    %v286 = vpack.c.bf16 %v126, %v126
    %v287 = vpack.c.bf16 %v129, %v129
    %v288 = vpack.c.bf16 %v131, %v131
    %v290 = vsel %vm204, %v281, 0
    %vm292 = vcmask 1043456
    %v294 = vsel %vm292, %v285, 0
    %296 = vmatpush.bf16.msra.mxu0 0
    %297 = vmatpush.bf16.msra.mxu0 0
    %298 = vmatpush.bf16.msra.mxu0 0
    %299 = vmatpush.bf16.msra.mxu0 0
    %300 = vmatpush.bf16.msra.mxu0 0
    %301 = vmatpush.bf16.msra.mxu0 0
    %302 = vmatpush.bf16.msra.mxu0 0
    %303 = vmatpush.bf16.msra.mxu0 %v294
    %304 = vmatmul.bf16.gmra.mxu0 %v290
    %v305 = vpop.f32.mrf.mxu0
    %v306 = vadd.f32 0.0, %v305
    %v307 = vpop.f32.mrf.mxu0
    %308 = vdwg.mxu0
    %v310 = vsel %vm204, %v282, 0
    %v313 = vsel %vm292, %v286, 0
    %315 = vmatpush.bf16.msra.mxu0 0
    %316 = vmatpush.bf16.msra.mxu0 0
    %317 = vmatpush.bf16.msra.mxu0 0
    %318 = vmatpush.bf16.msra.mxu0 0
    %319 = vmatpush.bf16.msra.mxu0 0
    %320 = vmatpush.bf16.msra.mxu0 0
    %321 = vmatpush.bf16.msra.mxu0 0
    %322 = vmatpush.bf16.msra.mxu0 %v313
    %323 = vmatmul.bf16.gmra.mxu0 %v310
    %v324 = vpop.f32.mrf.mxu0
    %v325 = vadd.f32 0.0, %v324
    %v326 = vpop.f32.mrf.mxu0
    %327 = vdwg.mxu0
    %v329 = vsel %vm204, %v283, 0
    %v332 = vsel %vm292, %v287, 0
    %334 = vmatpush.bf16.msra.mxu0 0
    %335 = vmatpush.bf16.msra.mxu0 0
    %336 = vmatpush.bf16.msra.mxu0 0
    %337 = vmatpush.bf16.msra.mxu0 0
    %338 = vmatpush.bf16.msra.mxu0 0
    %339 = vmatpush.bf16.msra.mxu0 0
    %340 = vmatpush.bf16.msra.mxu0 0
    %341 = vmatpush.bf16.msra.mxu0 %v332
    %342 = vmatmul.bf16.gmra.mxu0 %v329
    %v343 = vpop.f32.mrf.mxu0
    %v344 = vadd.f32 0.0, %v343
    %v345 = vpop.f32.mrf.mxu0
    %346 = vdwg.mxu0
    %v348 = vsel %vm204, %v284, 0
    %v351 = vsel %vm292, %v288, 0
    %353 = vmatpush.bf16.msra.mxu0 0
    %354 = vmatpush.bf16.msra.mxu0 0
    %355 = vmatpush.bf16.msra.mxu0 0
    %356 = vmatpush.bf16.msra.mxu0 0
    %357 = vmatpush.bf16.msra.mxu0 0
    %358 = vmatpush.bf16.msra.mxu0 0
    %359 = vmatpush.bf16.msra.mxu0 0
    %360 = vmatpush.bf16.msra.mxu0 %v351
    %361 = vmatmul.bf16.gmra.mxu0 %v348
    %v362 = vpop.f32.mrf.mxu0
    %v363 = vadd.f32 0.0, %v362
    %v364 = vpop.f32.mrf.mxu0
    %365 = vdwg.mxu0
    %366 = vst [vmem:[#allocation7] sm:$0xff] %v306
    %367 = vst [vmem:[#allocation7 + $0x8] sm:$0xff] %v325
    %368 = vst [vmem:[#allocation7 + $0x10] sm:$0xff] %v344
    %369 = vst [vmem:[#allocation7 + $0x18] sm:$0xff] %v363
    // Predicated region
    $region18: #{_causal_attention_impl.1} parent=1 // pred_check
      _
    $region19: #{_causal_attention_impl.1} parent=1 // pred_check_branch
      %371 = sbr.rel (0) target = $region21
    $region20: #{_causal_attention_impl.1} parent=1 // pred_region
      %373 = vsyncadd [#allocation4], 0
      %s374 = sshll.u32 [#allocation7], 4
      %s375 = int_to_ptr.vmem [resolvable:$true] %s374
      %s376 = sshll.u32 %s2, 4
      %s377 = int_to_ptr.hbm [resolvable:$true] %s376
      %382 = dma.vmem_to_hbm [thread:$0]  %s375, 512, %s377, [#allocation4], 128, 128, 8
    $region21: #{_causal_attention_impl.1} parent=1 // pred_fallthru
      _
    // Predicated region
    $region22: #{_causal_attention_impl.1} parent=1 // pred_check
      _
    $region23: #{_causal_attention_impl.1} parent=1 // pred_check_branch
      %384 = sbr.rel (0) target = $region25
    $region24: #{_causal_attention_impl.1} parent=1 // pred_region
      %386 = dma.done [#allocation4], 512
    $region25: #{_causal_attention_impl.1} parent=1 // pred_fallthru
      _
    %387 = vsyncpa [#allocation3], 1
    %388 = vsyncpa [#allocation6], 1
    %389 = vsyncpa [#allocation4], 1

// kernel: _causal_attention_impl.1
$region0: #{_causal_attention_impl.1}
  #allocation0 [shape = 'u32[]', space=smem, size = 0x4, offset = 0x4, fixed_abs, tag = 'smem constant byte address 0x4 - core index']
  #allocation1 [shape = 'u32[72,128]{1,0:T(1,128)}', space=vmem, size = 0x9000, scoped, tag = 'internal scratch']
  %s0 = inlined_call_operand.hbm [shape: f32[32,32], index: 0, kind: input, shape index: {}]
  %s1 = inlined_call_operand.hbm [shape: f32[32,384], index: 1, kind: input, shape index: {}]
  %s2 = inlined_call_operand.hbm [shape: f32[32,128], index: 2, kind: output, shape index: {}]
  %s3 = sld [smem:[#allocation0]]
  $region26: #{_causal_attention_impl.1} parent=0
    _
  %s5 = ssub.s32 1, %s3
  %s6 = scalar_select 0, %s5, %s3
  $region1: #{_causal_attention_impl.1} parent=0
    #allocation2 [shape = 'u8[16384]{0}', space=vmem, size = 0x4000, scoped, tag = 'input window, operand 0, single buffered']
    #allocation3 [shape = 's32[1]{0}', space=sflag, size = 0x4, scoped, tag = 'scoped memory for _causal_attention_impl.1']
    #allocation4 [shape = 's32[1]{0}', space=sflag, size = 0x4, scoped, tag = 'scoped memory for _causal_attention_impl.1']
    #allocation5 [shape = 'u8[49152]{0}', space=vmem, size = 0xc000, scoped, tag = 'input window, operand 1, single buffered']
    #allocation6 [shape = 's32[1]{0}', space=sflag, size = 0x4, scoped, tag = 'scoped memory for _causal_attention_impl.1']
    #allocation7 [shape = 'u8[16384]{0}', space=vmem, size = 0x4000, scoped, tag = 'output window, operand 0, single buffered']
    %7 = vsyncpa [#allocation3], 0
    %8 = vsyncpa [#allocation6], 0
    %9 = vsyncpa [#allocation4], 0
    // Predicated region
    $region2: #{_causal_attention_impl.1} parent=1 // pred_check
      _
    $region3: #{_causal_attention_impl.1} parent=1 // pred_check_branch
      %11 = sbr.rel (0) target = $region5
    $region4: #{_causal_attention_impl.1} parent=1 // pred_region
      %13 = vsyncadd [#allocation3], 0
      %s14 = sshll.u32 %s0, 4
      %s15 = int_to_ptr.hbm [resolvable:$true] %s14
      %s16 = sshll.u32 [#allocation2], 4
      %s17 = int_to_ptr.vmem [resolvable:$true] %s16
      %22 = dma.hbm_to_vmem [thread:$0]  %s15, 512, %s17, [#allocation3], 128, 128, 8
    $region5: #{_causal_attention_impl.1} parent=1 // pred_fallthru
      _
    // Predicated region
    $region6: #{_causal_attention_impl.1} parent=1 // pred_check
      _
    $region7: #{_causal_attention_impl.1} parent=1 // pred_check_branch
      %24 = sbr.rel (0) target = $region9
    $region8: #{_causal_attention_impl.1} parent=1 // pred_region
      %26 = vsyncadd [#allocation6], 0
      %s27 = sshll.u32 %s1, 4
      %s28 = int_to_ptr.hbm [resolvable:$true] %s27
      %s29 = sshll.u32 [#allocation5], 4
      %s30 = int_to_ptr.vmem [resolvable:$true] %s29
      %35 = dma.hbm_to_vmem [thread:$0]  %s28, 1536, %s30, [#allocation6], 384, 384, 24
    $region9: #{_causal_attention_impl.1} parent=1 // pred_fallthru
      _
    // Predicated region
    $region10: #{_causal_attention_impl.1} parent=1 // pred_check
      _
    $region11: #{_causal_attention_impl.1} parent=1 // pred_check_branch
      %37 = sbr.rel (0) target = $region13
    $region12: #{_causal_attention_impl.1} parent=1 // pred_region
      %39 = dma.done [#allocation3], 512
    $region13: #{_causal_attention_impl.1} parent=1 // pred_fallthru
      _
    // Predicated region
    $region14: #{_causal_attention_impl.1} parent=1 // pred_check
      _
    $region15: #{_causal_attention_impl.1} parent=1 // pred_check_branch
      %41 = sbr.rel (0) target = $region17
    $region16: #{_causal_attention_impl.1} parent=1 // pred_region
      %43 = dma.done [#allocation6], 1536
    $region17: #{_causal_attention_impl.1} parent=1 // pred_fallthru
      _
    %v45 = vld [vmem:[#allocation2] sm:$0xff]
    %v46 = vld [vmem:[#allocation2 + $0x8] sm:$0xff]
    %v47 = vld [vmem:[#allocation2 + $0x10] sm:$0xff]
    %v48 = vld [vmem:[#allocation2 + $0x18] sm:$0xff]
    %v49 = vpack.c.bf16 %v46, %v45
    %v50 = vpack.c.bf16 %v48, %v47
    %v51 = vld [vmem:[#allocation5] sm:$0xff]
    %v52 = vld [vmem:[#allocation5 + $0x8] sm:$0xff]
    %v53 = vld [vmem:[#allocation5 + $0x10] sm:$0xff]
    %v54 = vld [vmem:[#allocation5 + $0x18] sm:$0xff]
    %v55 = vld [vmem:[#allocation5 + $0x20] sm:$0xff]
    %v56 = vld [vmem:[#allocation5 + $0x28] sm:$0xff]
    %v57 = vld [vmem:[#allocation5 + $0x30] sm:$0xff]
    %v58 = vld [vmem:[#allocation5 + $0x38] sm:$0xff]
    %v59 = vld [vmem:[#allocation5 + $0x40] sm:$0xff]
    %v60 = vld [vmem:[#allocation5 + $0x48] sm:$0xff]
    %v61 = vld [vmem:[#allocation5 + $0x50] sm:$0xff]
    %v62 = vld [vmem:[#allocation5 + $0x58] sm:$0xff]
    %v63 = vpack.c.bf16 %v54, %v51
    %v64 = vpack.c.bf16 %v55, %v52
    %v65 = vpack.c.bf16 %v56, %v53
    %v66 = vpack.c.bf16 %v60, %v57
    %v67 = vpack.c.bf16 %v61, %v58
    %v68 = vpack.c.bf16 %v62, %v59
    %vm69 = vcmask 261120
    %v71 = vsel %vm69, %v49, 0
    %v74 = vsel %vm69, %v50, 0
    %76 = vmatpush.bf16.msra.mxu0 0
    %77 = vmatpush.bf16.msra.mxu0 0
    %78 = vmatpush.bf16.msra.mxu0 0
    %79 = vmatpush.bf16.msra.mxu0 0
    %80 = vmatpush.bf16.msra.mxu0 0
    %81 = vmatpush.bf16.msra.mxu0 0
    %82 = vmatpush.bf16.msra.mxu0 %v66
    %83 = vmatpush.bf16.msra.mxu0 %v63
    %84 = vmatmul.bf16.gmra.mxu0 %v71
    %v85 = vpop.f32.mrf.mxu0
    %v86 = vadd.f32 0.0, %v85
    %v87 = vpop.f32.mrf.mxu0
    %v88 = vadd.f32 0.0, %v87
    %89 = vmatmul.bf16.gmra.mxu0 %v74
    %v90 = vpop.f32.mrf.mxu0
    %v91 = vadd.f32 0.0, %v90
    %v92 = vpop.f32.mrf.mxu0
    %v93 = vadd.f32 0.0, %v92
    %94 = vdwg.mxu0
    %95 = vmatpush.bf16.msra.mxu0 0
    %96 = vmatpush.bf16.msra.mxu0 0
    %97 = vmatpush.bf16.msra.mxu0 0
    %98 = vmatpush.bf16.msra.mxu0 0
    %99 = vmatpush.bf16.msra.mxu0 0
    %100 = vmatpush.bf16.msra.mxu0 0
    %101 = vmatpush.bf16.msra.mxu0 %v67
    %102 = vmatpush.bf16.msra.mxu0 %v64
    %103 = vmatmul.bf16.gmra.mxu0 %v71
    %v104 = vpop.f32.mrf.mxu0
    %v105 = vadd.f32 0.0, %v104
    %v106 = vpop.f32.mrf.mxu0
    %v107 = vadd.f32 0.0, %v106
    %108 = vmatmul.bf16.gmra.mxu0 %v74
    %v109 = vpop.f32.mrf.mxu0
    %v110 = vadd.f32 0.0, %v109
    %v111 = vpop.f32.mrf.mxu0
    %v112 = vadd.f32 0.0, %v111
    %113 = vdwg.mxu0
    %114 = vmatpush.bf16.msra.mxu0 0
    %115 = vmatpush.bf16.msra.mxu0 0
    %116 = vmatpush.bf16.msra.mxu0 0
    %117 = vmatpush.bf16.msra.mxu0 0
    %118 = vmatpush.bf16.msra.mxu0 0
    %119 = vmatpush.bf16.msra.mxu0 0
    %120 = vmatpush.bf16.msra.mxu0 %v68
    %121 = vmatpush.bf16.msra.mxu0 %v65
    %122 = vmatmul.bf16.gmra.mxu0 %v71
    %v123 = vpop.f32.mrf.mxu0
    %v124 = vadd.f32 0.0, %v123
    %v125 = vpop.f32.mrf.mxu0
    %v126 = vadd.f32 0.0, %v125
    %127 = vmatmul.bf16.gmra.mxu0 %v74
    %v128 = vpop.f32.mrf.mxu0
    %v129 = vadd.f32 0.0, %v128
    %v130 = vpop.f32.mrf.mxu0
    %v131 = vadd.f32 0.0, %v130
    %132 = vdwg.mxu0
    %v133 = vpack.c.bf16 %v86, %v86
    %v134 = vpack.c.bf16 %v88, %v88
    %v135 = vpack.c.bf16 %v91, %v91
    %v136 = vpack.c.bf16 %v93, %v93
    %v137 = vpack.c.bf16 %v105, %v105
    %v138 = vpack.c.bf16 %v107, %v107
    %v139 = vpack.c.bf16 %v110, %v110
    %v140 = vpack.c.bf16 %v112, %v112
    %141 = vmatpush.bf16.xpose.msra.mxu0 0
    %142 = vmatpush.bf16.xpose.msra.mxu0 0
    %143 = vmatpush.bf16.xpose.msra.mxu0 0
    %144 = vmatpush.bf16.xpose.msra.mxu0 0
    %145 = vmatpush.bf16.xpose.msra.mxu0 0
    %146 = vmatpush.bf16.xpose.msra.mxu0 0
    %147 = vmatpush.bf16.xpose.msra.mxu0 0
    %148 = vmatpush.bf16.xpose.msra.mxu0 %v137
    %149 = vmatmul.bf16.gmra.mxu0 %v133
    %v150 = vpop.f32.mrf.mxu0
    %v151 = vadd.f32 0.0, %v150
    %v152 = vpop.f32.mrf.mxu0
    %153 = vdwg.mxu0
    %154 = vmatpush.bf16.xpose.msra.mxu0 0
    %155 = vmatpush.bf16.xpose.msra.mxu0 0
    %156 = vmatpush.bf16.xpose.msra.mxu0 0
    %157 = vmatpush.bf16.xpose.msra.mxu0 0
    %158 = vmatpush.bf16.xpose.msra.mxu0 0
    %159 = vmatpush.bf16.xpose.msra.mxu0 0
    %160 = vmatpush.bf16.xpose.msra.mxu0 0
    %161 = vmatpush.bf16.xpose.msra.mxu0 %v138
    %162 = vmatmul.bf16.gmra.mxu0 %v134
    %v163 = vpop.f32.mrf.mxu0
    %v164 = vadd.f32 0.0, %v163
    %v165 = vpop.f32.mrf.mxu0
    %166 = vdwg.mxu0
    %167 = vmatpush.bf16.xpose.msra.mxu0 0
    %168 = vmatpush.bf16.xpose.msra.mxu0 0
    %169 = vmatpush.bf16.xpose.msra.mxu0 0
    %170 = vmatpush.bf16.xpose.msra.mxu0 0
    %171 = vmatpush.bf16.xpose.msra.mxu0 0
    %172 = vmatpush.bf16.xpose.msra.mxu0 0
    %173 = vmatpush.bf16.xpose.msra.mxu0 0
    %174 = vmatpush.bf16.xpose.msra.mxu0 %v139
    %175 = vmatmul.bf16.gmra.mxu0 %v135
    %v176 = vpop.f32.mrf.mxu0
    %v177 = vadd.f32 0.0, %v176
    %v178 = vpop.f32.mrf.mxu0
    %179 = vdwg.mxu0
    %180 = vmatpush.bf16.xpose.msra.mxu0 0
    %181 = vmatpush.bf16.xpose.msra.mxu0 0
    %182 = vmatpush.bf16.xpose.msra.mxu0 0
    %183 = vmatpush.bf16.xpose.msra.mxu0 0
    %184 = vmatpush.bf16.xpose.msra.mxu0 0
    %185 = vmatpush.bf16.xpose.msra.mxu0 0
    %186 = vmatpush.bf16.xpose.msra.mxu0 0
    %187 = vmatpush.bf16.xpose.msra.mxu0 %v140
    %188 = vmatmul.bf16.gmra.mxu0 %v136
    %v189 = vpop.f32.mrf.mxu0
    %v190 = vadd.f32 0.0, %v189
    %v191 = vpop.f32.mrf.mxu0
    %192 = vdwg.mxu0
    %v193 = vlaneseq
    %v194 = vshrl.u32 %v193, 7
    %v195 = vlaneseq
    %v196 = vand.u32 %v195, 127
    %vm197 = vcmp.gt.s32.totalorder %v196, %v194
    %v198 = vsel %vm197, 1, 0
    %vm199 = vcmp.eq.s32.totalorder %v198, 1
    %v200 = vsel %vm199, -inf, %v151
    %v201 = vsel %vm199, -inf, %v164
    %v202 = vsel %vm199, -inf, %v177
    %v203 = vsel %vm199, -inf, %v190
    %vm204 = vcmask 64512
    %v205 = vsel %vm204, %v200, -inf
    %v206 = vrot.slane %v205, 4
    %v207 = vmax.f32 %v205, %v206
    %v208 = vrot.slane %v207, 2
    %v209 = vmax.f32 %v207, %v208
    %v210 = vrot.slane %v209, 1
    %v211 = vmax.f32 %v209, %v210
    %v212 = vsel %vm204, %v201, -inf
    %v213 = vrot.slane %v212, 4
    %v214 = vmax.f32 %v212, %v213
    %v215 = vrot.slane %v214, 2
    %v216 = vmax.f32 %v214, %v215
    %v217 = vrot.slane %v216, 1
    %v218 = vmax.f32 %v216, %v217
    %v219 = vsel %vm204, %v202, -inf
    %v220 = vrot.slane %v219, 4
    %v221 = vmax.f32 %v219, %v220
    %v222 = vrot.slane %v221, 2
    %v223 = vmax.f32 %v221, %v222
    %v224 = vrot.slane %v223, 1
    %v225 = vmax.f32 %v223, %v224
    %v226 = vsel %vm204, %v203, -inf
    %v227 = vrot.slane %v226, 4
    %v228 = vmax.f32 %v226, %v227
    %v229 = vrot.slane %v228, 2
    %v230 = vmax.f32 %v228, %v229
    %v231 = vrot.slane %v230, 1
    %v232 = vmax.f32 %v230, %v231
    %v233 = vsub.f32 %v200, %v211
    %v234 = vsub.f32 %v201, %v218
    %v235 = vsub.f32 %v202, %v225
    %v236 = vsub.f32 %v203, %v232
    %v237 = vmul.f32 %v233, 1.442695
    %v238 = vpow.pop %v237
    %v239 = vmul.f32 %v234, 1.442695
    %v240 = vpow.pop %v239
    %v241 = vmul.f32 %v235, 1.442695
    %v242 = vpow.pop %v241
    %v243 = vmul.f32 %v236, 1.442695
    %v244 = vpow.pop %v243
    %v245 = vsel %vm204, %v238, 0.0
    %v246 = vrot.slane %v245, 4
    %v247 = vadd.f32 %v245, %v246
    %v248 = vrot.slane %v247, 2
    %v249 = vadd.f32 %v247, %v248
    %v250 = vrot.slane %v249, 1
    %v251 = vadd.f32 %v249, %v250
    %v252 = vsel %vm204, %v240, 0.0
    %v253 = vrot.slane %v252, 4
    %v254 = vadd.f32 %v252, %v253
    %v255 = vrot.slane %v254, 2
    %v256 = vadd.f32 %v254, %v255
    %v257 = vrot.slane %v256, 1
    %v258 = vadd.f32 %v256, %v257
    %v259 = vsel %vm204, %v242, 0.0
    %v260 = vrot.slane %v259, 4
    %v261 = vadd.f32 %v259, %v260
    %v262 = vrot.slane %v261, 2
    %v263 = vadd.f32 %v261, %v262
    %v264 = vrot.slane %v263, 1
    %v265 = vadd.f32 %v263, %v264
    %v266 = vsel %vm204, %v244, 0.0
    %v267 = vrot.slane %v266, 4
    %v268 = vadd.f32 %v266, %v267
    %v269 = vrot.slane %v268, 2
    %v270 = vadd.f32 %v268, %v269
    %v271 = vrot.slane %v270, 1
    %v272 = vadd.f32 %v270, %v271
    %v273 = vrcp.pop %v251
    %v274 = vrcp.pop %v258
    %v275 = vrcp.pop %v265
    %v276 = vrcp.pop %v272
    %v277 = vmul.f32 %v238, %v273
    %v278 = vmul.f32 %v240, %v274
    %v279 = vmul.f32 %v242, %v275
    %v280 = vmul.f32 %v244, %v276
    %v281 = vpack.c.bf16 %v277, %v277
    %v282 = vpack.c.bf16 %v278, %v278
    %v283 = vpack.c.bf16 %v279, %v279
    %v284 = vpack.c.bf16 %v280, %v280
    %v285 = vpack.c.bf16 %v124, %v124
    %v286 = vpack.c.bf16 %v126, %v126
    %v287 = vpack.c.bf16 %v129, %v129
    %v288 = vpack.c.bf16 %v131, %v131
    %v290 = vsel %vm204, %v281, 0
    %vm292 = vcmask 1043456
    %v294 = vsel %vm292, %v285, 0
    %296 = vmatpush.bf16.msra.mxu0 0
    %297 = vmatpush.bf16.msra.mxu0 0
    %298 = vmatpush.bf16.msra.mxu0 0
    %299 = vmatpush.bf16.msra.mxu0 0
    %300 = vmatpush.bf16.msra.mxu0 0
    %301 = vmatpush.bf16.msra.mxu0 0
    %302 = vmatpush.bf16.msra.mxu0 0
    %303 = vmatpush.bf16.msra.mxu0 %v294
    %304 = vmatmul.bf16.gmra.mxu0 %v290
    %v305 = vpop.f32.mrf.mxu0
    %v306 = vadd.f32 0.0, %v305
    %v307 = vpop.f32.mrf.mxu0
    %308 = vdwg.mxu0
    %v310 = vsel %vm204, %v282, 0
    %v313 = vsel %vm292, %v286, 0
    %315 = vmatpush.bf16.msra.mxu0 0
    %316 = vmatpush.bf16.msra.mxu0 0
    %317 = vmatpush.bf16.msra.mxu0 0
    %318 = vmatpush.bf16.msra.mxu0 0
    %319 = vmatpush.bf16.msra.mxu0 0
    %320 = vmatpush.bf16.msra.mxu0 0
    %321 = vmatpush.bf16.msra.mxu0 0
    %322 = vmatpush.bf16.msra.mxu0 %v313
    %323 = vmatmul.bf16.gmra.mxu0 %v310
    %v324 = vpop.f32.mrf.mxu0
    %v325 = vadd.f32 0.0, %v324
    %v326 = vpop.f32.mrf.mxu0
    %327 = vdwg.mxu0
    %v329 = vsel %vm204, %v283, 0
    %v332 = vsel %vm292, %v287, 0
    %334 = vmatpush.bf16.msra.mxu0 0
    %335 = vmatpush.bf16.msra.mxu0 0
    %336 = vmatpush.bf16.msra.mxu0 0
    %337 = vmatpush.bf16.msra.mxu0 0
    %338 = vmatpush.bf16.msra.mxu0 0
    %339 = vmatpush.bf16.msra.mxu0 0
    %340 = vmatpush.bf16.msra.mxu0 0
    %341 = vmatpush.bf16.msra.mxu0 %v332
    %342 = vmatmul.bf16.gmra.mxu0 %v329
    %v343 = vpop.f32.mrf.mxu0
    %v344 = vadd.f32 0.0, %v343
    %v345 = vpop.f32.mrf.mxu0
    %346 = vdwg.mxu0
    %v348 = vsel %vm204, %v284, 0
    %v351 = vsel %vm292, %v288, 0
    %353 = vmatpush.bf16.msra.mxu0 0
    %354 = vmatpush.bf16.msra.mxu0 0
    %355 = vmatpush.bf16.msra.mxu0 0
    %356 = vmatpush.bf16.msra.mxu0 0
    %357 = vmatpush.bf16.msra.mxu0 0
    %358 = vmatpush.bf16.msra.mxu0 0
    %359 = vmatpush.bf16.msra.mxu0 0
    %360 = vmatpush.bf16.msra.mxu0 %v351
    %361 = vmatmul.bf16.gmra.mxu0 %v348
    %v362 = vpop.f32.mrf.mxu0
    %v363 = vadd.f32 0.0, %v362
    %v364 = vpop.f32.mrf.mxu0
    %365 = vdwg.mxu0
    %366 = vst [vmem:[#allocation7] sm:$0xff] %v306
    %367 = vst [vmem:[#allocation7 + $0x8] sm:$0xff] %v325
    %368 = vst [vmem:[#allocation7 + $0x10] sm:$0xff] %v344
    %369 = vst [vmem:[#allocation7 + $0x18] sm:$0xff] %v363
    // Predicated region
    $region18: #{_causal_attention_impl.1} parent=1 // pred_check
      _
    $region19: #{_causal_attention_impl.1} parent=1 // pred_check_branch
      %371 = sbr.rel (0) target = $region21
    $region20: #{_causal_attention_impl.1} parent=1 // pred_region
      %373 = vsyncadd [#allocation4], 0
      %s374 = sshll.u32 [#allocation7], 4
      %s375 = int_to_ptr.vmem [resolvable:$true] %s374
      %s376 = sshll.u32 %s2, 4
      %s377 = int_to_ptr.hbm [resolvable:$true] %s376
      %382 = dma.vmem_to_hbm [thread:$0]  %s375, 512, %s377, [#allocation4], 128, 128, 8
    $region21: #{_causal_attention_impl.1} parent=1 // pred_fallthru
      _
    // Predicated region
    $region22: #{_causal_attention_impl.1} parent=1 // pred_check
      _
    $region23: #{_causal_attention_impl.1} parent=1 // pred_check_branch
      %384 = sbr.rel (0) target = $region25
    $region24: #{_causal_attention_impl.1} parent=1 // pred_region
      %386 = dma.done [#allocation4], 512
    $region25: #{_causal_attention_impl.1} parent=1 // pred_fallthru
      _
    %387 = vsyncpa [#allocation3], 1
    %388 = vsyncpa [#allocation6], 1
    %389 = vsyncpa [#allocation4], 1

</llo_original>
